<compile_context>
chip_gen: v7x
topology: tpu7x:2x2x1
jax: 0.10.0
libtpu: 0.0.40
codegen_flags: <defaults>
</compile_context>

<pallas_src>
import math
import functools

import jax
import jax.numpy as jnp
from jax.experimental import pallas as pl
from jax.experimental.pallas import tpu as pltpu


_SQRT_2_OVER_PI = math.sqrt(2.0 / math.pi)


def _gelu_tanh(x):
    # matches torch: 0.5*x*(1+tanh(sqrt(2/pi)*(x+0.044715*x^3)))  (done in f32)
    return 0.5 * x * (1.0 + jnp.tanh(_SQRT_2_OVER_PI * (x + 0.044715 * x * x * x)))


def mlp_kernel(x_ref, wfc_ref, bfc_ref, wproj_ref, bproj_ref, o_ref, acc_ref):
    # x_ref:     (tm, n_embd)
    # wfc_ref:   (n_embd, tk)     bfc_ref:   (1, tk)
    # wproj_ref: (tk, n_embd)     bproj_ref: (1, n_embd)
    # o_ref:     (tm, n_embd)     acc_ref:   (tm, n_embd) f32 scratch
    k = pl.program_id(1)

    @pl.when(k == 0)
    def _():
        acc_ref[...] = jnp.zeros_like(acc_ref)

    # First matmul on the k-th column block of W_fc; bias + gelu are columnwise
    # on h, so this K-tiling is exact. Gelu math stays in f32.
    h = jnp.dot(x_ref[...], wfc_ref[...], preferred_element_type=jnp.float32)
    h = _gelu_tanh(h + bfc_ref[...].astype(jnp.float32))
    # Feed the second MXU matmul in the weight dtype (bf16 by default);
    # accumulation stays in f32.
    h = h.astype(wproj_ref.dtype)
    acc_ref[...] += jnp.dot(h, wproj_ref[...], preferred_element_type=jnp.float32)

    @pl.when(k == pl.num_programs(1) - 1)
    def _():
        # b_proj added exactly once, at finalize; cast to output dtype only here.
        o_ref[...] = (acc_ref[...] + bproj_ref[...].astype(jnp.float32)).astype(o_ref.dtype)


def _round_up(x, m):
    return ((x + m - 1) // m) * m


def _sublane_multiple(dtype):
    # 8 rows for 32-bit, 16 for bf16, 32 for 8-bit types -> clean (8,128) tiles.
    bits = jnp.dtype(dtype).itemsize * 8
    return max(8, 256 // bits)


def _tpu_target():
    """Returns (physical_vmem_bytes, tensorcores_per_chip); conservative default."""
    vmem, cores = 64 << 20, 1  # safe default (v7x-sized VMEM, single TC)
    try:
        kind = jax.devices()[0].device_kind.lower()
    except Exception:
        return vmem, cores
    if "v6" in kind:                       # v6e
        vmem, cores = 128 << 20, 1
    elif "v5p" in kind:                    # v5p megacore
        vmem, cores = 128 << 20, 2
    elif "v5" in kind:                     # v5e / v5 lite
        vmem, cores = 128 << 20, 1
    elif "v7" in kind or "7x" in kind:     # v7x: 64 MiB VMEM per TC, 2 TCs
        vmem, cores = 64 << 20, 2
    elif "v4" in kind:                     # v4 megacore
        vmem, cores = 128 << 20, 2
    return vmem, cores


def _select_tiles(M, n_embd, n_state, in_bytes, out_bytes, budget, cores,
                  sublane, tm_max, tk_max):
    """Pick (tm, tk): keep tm (intensity lever) large, shrink tk first on budget."""
    m_ceil = _round_up(max(M, 1), sublane)
    tm_cap = min(_round_up(tm_max, sublane), m_ceil)
    if cores > 1 and m_ceil >= cores * sublane:
        # Guarantee at least one row block per TensorCore when M permits.
        per_core = _round_up(pl.cdiv(M, cores), sublane)
        tm_cap = min(tm_cap, per_core)

    tm_cands = sorted(
        {c for c in (1024, 768, 512, 384, 256, 192, 128, 96, 64, 48, 32, 16, 8, tm_cap)
         if c % sublane == 0 and 0 < c <= tm_cap},
        reverse=True)
    # Prefer candidates whose last-tile padding waste is bounded (<= 12.5%).
    ok = [c for c in tm_cands if (_round_up(M, c) - M) / _round_up(M, c) <= 0.125]
    tm_cands = ok if ok else tm_cands

    k_ceil = _round_up(max(n_state, 1), 128)
    tk_cands = sorted(
        {c for c in (tk_max, 512, 256, 128) if c % 128 == 0 and c <= max(k_ceil, 128)},
        reverse=True)

    def footprint(tm, tk):
        x_t = 2 * tm * n_embd * in_bytes      # x tile, double buffered
        w_t = 4 * n_embd * tk * in_bytes      # W_fc + W_proj tiles, double buffered
        b_t = 2 * (tk + n_embd) * in_bytes    # bias tiles
        o_t = 2 * tm * n_embd * out_bytes     # output tile, double buffered
        acc = tm * n_embd * 4                 # f32 accumulator scratch
        h_t = tm * tk * 4                     # f32 gelu intermediate
        return x_t + w_t + b_t + o_t + acc + h_t

    for tm in tm_cands:          # tm largest-first...
        for tk in tk_cands:      # ...shrink tk first when over VMEM budget
            if footprint(tm, tk) <= budget:
                return tm, tk
    return tm_cands[-1], 128     # minimal fallback; fits any realistic VMEM


@functools.partial(jax.jit, static_argnames=("compute_dtype", "tm_max", "tk_max"))
def mlp_pallas(x, w_fc, b_fc, w_proj, b_proj, *, compute_dtype=jnp.bfloat16,
               tm_max=1024, tk_max=512):
    """x: (..., n_embd). w_fc: (n_embd, n_state), w_proj: (n_state, n_embd)."""
    orig_shape = x.shape
    out_dtype = x.dtype
    n_embd = orig_shape[-1]
    n_state = w_fc.shape[1]

    cdt = jnp.dtype(compute_dtype) if compute_dtype is not None else jnp.dtype(x.dtype)
    in_bytes = cdt.itemsize
    out_bytes = jnp.dtype(out_dtype).itemsize
    sublane = _sublane_multiple(cdt)

    vmem_phys, cores = _tpu_target()
    vmem_limit = min(int(vmem_phys * 0.82), 112 << 20)   # ~105 MiB (128) / ~52 MiB (64)
    tile_budget = vmem_limit - (6 << 20)                 # headroom for compiler scratch

    x2 = x.reshape(-1, n_embd)
    M = x2.shape[0]

    tm, tk = _select_tiles(M, n_embd, n_state, in_bytes, out_bytes,
                           tile_budget, cores, sublane, tm_max, tk_max)

    M_pad = _round_up(M, tm)
    K_pad = _round_up(n_state, tk)

    # Cast MXU operands to the compute dtype (bf16 by default); pad rows / K.
    x2 = x2.astype(cdt)
    if M_pad != M:
        x2 = jnp.pad(x2, ((0, M_pad - M), (0, 0)))

    w_fc_c = w_fc.astype(cdt)
    b_fc_c = b_fc.astype(cdt).reshape(1, n_state)
    w_proj_c = w_proj.astype(cdt)
    b_proj_c = b_proj.astype(cdt).reshape(1, n_embd)
    if K_pad != n_state:
        dk = K_pad - n_state
        # Zero padding is exact: bfc pad is 0 so gelu(0)=0, and the padded rows
        # of W_proj are 0, contributing nothing to the accumulator.
        w_fc_c = jnp.pad(w_fc_c, ((0, 0), (0, dk)))
        b_fc_c = jnp.pad(b_fc_c, ((0, 0), (0, dk)))
        w_proj_c = jnp.pad(w_proj_c, ((0, dk), (0, 0)))

    grid = (M_pad // tm, K_pad // tk)

    cost = pl.CostEstimate(
        flops=4 * M_pad * n_embd * K_pad,                 # two matmuls
        transcendentals=M_pad * K_pad,                    # tanh per hidden element
        bytes_accessed=(M_pad * n_embd * (in_bytes + out_bytes)
                        + grid[0] * (2 * n_embd * K_pad + K_pad + n_embd) * in_bytes),
    )

    out = pl.pallas_call(
        mlp_kernel,
        out_shape=jax.ShapeDtypeStruct((M_pad, n_embd), out_dtype),
        grid_spec=pltpu.PrefetchScalarGridSpec(
            num_scalar_prefetch=0,
            grid=grid,
            in_specs=[
                pl.BlockSpec((tm, n_embd), lambda i, k: (i, 0)),   # x rows (resident over k)
                pl.BlockSpec((n_embd, tk), lambda i, k: (0, k)),   # W_fc column tile
                pl.BlockSpec((1, tk), lambda i, k: (0, k)),        # b_fc tile
                pl.BlockSpec((tk, n_embd), lambda i, k: (k, 0)),   # W_proj row tile
                pl.BlockSpec((1, n_embd), lambda i, k: (0, 0)),    # b_proj (full)
            ],
            out_specs=pl.BlockSpec((tm, n_embd), lambda i, k: (i, 0)),
            scratch_shapes=[pltpu.VMEM((tm, n_embd), jnp.float32)],
        ),
        compiler_params=pltpu.CompilerParams(
            # M axis shardable across TCs (v7x/v5p megacore); n_state is the reduction.
            dimension_semantics=("parallel", "arbitrary"),
            vmem_limit_bytes=vmem_limit,
        ),
        cost_estimate=cost,
    )(x2, w_fc_c, b_fc_c, w_proj_c, b_proj_c)

    out = out[:M]
    return out.reshape(orig_shape)


def mlp_ref(x, w_fc, b_fc, w_proj, b_proj):
    h = _gelu_tanh(x @ w_fc + b_fc)
    return h @ w_proj + b_proj


if __name__ == "__main__":
    key = jax.random.PRNGKey(0)

    def run_case(B, T, n_embd, n_state, keys):
        k_x, k_wfc, k_bfc, k_wproj, k_bproj = keys
        x = jax.random.normal(k_x, (B, T, n_embd), dtype=jnp.float32)
        # deterministic init; stored as (in, out) = transpose of nn.Linear's (out, in)
        w_fc = jax.random.normal(k_wfc, (n_embd, n_state), dtype=jnp.float32) * 0.02
        b_fc = jax.random.normal(k_bfc, (n_state,), dtype=jnp.float32) * 0.02
        w_proj = jax.random.normal(k_wproj, (n_state, n_embd), dtype=jnp.float32) * 0.02
        b_proj = jax.random.normal(k_bproj, (n_embd,), dtype=jnp.float32) * 0.02

        out = mlp_pallas(x, w_fc, b_fc, w_proj, b_proj)
        out = jax.block_until_ready(out)

        ref = mlp_ref(x, w_fc, b_fc, w_proj, b_proj)
        assert out.shape == (B, T, n_embd)
        # bf16 MXU operands (f32 accumulation): loosened tolerance vs f32 reference.
        assert jnp.allclose(out, ref, atol=2e-2, rtol=2e-2), "mismatch vs reference"

    # small shapes: batch=2, seq=8, n_embd=32, n_state=4*n_embd=128
    run_case(2, 8, 32, 128, jax.random.split(key, 5))
    # ragged shapes: exercise row padding (M=14) and n_state zero-padding (100 -> 128)
    run_case(2, 7, 32, 100, jax.random.split(jax.random.PRNGKey(1), 5))

    print("KERNEL_OK")
</pallas_src>

<mosaic_0001>
module attributes {stable_mosaic.version = 11 : i64} {
  func.func @mlp_kernel(%arg0: i32, %arg1: i32, %arg2: memref<16x32xbf16, #tpu.memory_space<vmem>>, %arg3: memref<32x128xbf16, #tpu.memory_space<vmem>>, %arg4: memref<1x128xbf16, #tpu.memory_space<vmem>>, %arg5: memref<128x32xbf16, #tpu.memory_space<vmem>>, %arg6: memref<1x32xbf16, #tpu.memory_space<vmem>>, %arg7: memref<16x32xf32, #tpu.memory_space<vmem>>, %arg8: memref<16x32xf32, #tpu.memory_space<vmem>>) attributes {dimension_semantics = [#tpu.dimension_semantics<parallel>, #tpu.dimension_semantics<arbitrary>], iteration_bounds = array<i64: 1, 1>, scalar_prefetch = 0 : i64, scratch_operands = 1 : i64, tpu.core_type = #tpu.core_type<tc>, window_params = [{transform_indices = @transform_0, window_bounds = array<i64: 16, 32>}, {transform_indices = @transform_1, window_bounds = array<i64: 32, 128>}, {transform_indices = @transform_2, window_bounds = array<i64: 1, 128>}, {transform_indices = @transform_3, window_bounds = array<i64: 128, 32>}, {pipeline_mode = #tpu.pipeline_mode<synchronous>, transform_indices = @transform_4, window_bounds = array<i64: 1, 32>}, {transform_indices = @transform_5, window_bounds = array<i64: 16, 32>}]} {
    %c0_i32 = arith.constant 0 : i32
    %0 = arith.cmpi eq, %arg1, %c0_i32 : i32
    %1 = arith.extui %0 : i1 to i32
    %c0_i32_0 = arith.constant 0 : i32
    %2 = arith.cmpi ne, %1, %c0_i32_0 : i32
    scf.if %2 {
      %cst_19 = arith.constant 0.000000e+00 : f32
      %32 = vector.broadcast %cst_19 : f32 to vector<16x32xf32>
      %c0_20 = arith.constant 0 : index
      %c0_21 = arith.constant 0 : index
      %33 = vector.load %arg8[%c0_20, %c0_21] : memref<16x32xf32, #tpu.memory_space<vmem>>, vector<16x32xf32>
      tpu.vector_store %arg8[%c0_20, %c0_21], %32 {strides = array<i32>} : memref<16x32xf32, #tpu.memory_space<vmem>>, vector<16x32xf32>,
    } else {
    }
    %c0 = arith.constant 0 : index
    %c0_1 = arith.constant 0 : index
    %3 = vector.load %arg2[%c0, %c0_1] : memref<16x32xbf16, #tpu.memory_space<vmem>>, vector<16x32xbf16>
    %c0_2 = arith.constant 0 : index
    %c0_3 = arith.constant 0 : index
    %4 = vector.load %arg3[%c0_2, %c0_3] : memref<32x128xbf16, #tpu.memory_space<vmem>>, vector<32x128xbf16>
    %cst = arith.constant dense<0.000000e+00> : vector<16x128xf32>
    %5 = tpu.matmul %3, %4, %cst {dimension_numbers = #tpu.dot_dimension_numbers<[1], [0], [0], [1], [0, 0, 1, 1], [], []>} : vector<16x32xbf16>, vector<32x128xbf16>, vector<16x128xf32> -> vector<16x128xf32>
    %c0_4 = arith.constant 0 : index
    %c0_5 = arith.constant 0 : index
    %6 = vector.load %arg4[%c0_4, %c0_5] : memref<1x128xbf16, #tpu.memory_space<vmem>>, vector<1x128xbf16>
    %7 = arith.extf %6 : vector<1x128xbf16> to vector<1x128xf32>
    %8 = vector.broadcast %7 : vector<1x128xf32> to vector<16x128xf32>
    %9 = arith.addf %5, %8 : vector<16x128xf32>
    %cst_6 = arith.constant 5.000000e-01 : f32
    %10 = vector.broadcast %cst_6 : f32 to vector<16x128xf32>
    %11 = arith.mulf %10, %9 : vector<16x128xf32>
    %cst_7 = arith.constant 4.471500e-02 : f32
    %12 = vector.broadcast %cst_7 : f32 to vector<16x128xf32>
    %13 = arith.mulf %12, %9 : vector<16x128xf32>
    %14 = arith.mulf %13, %9 : vector<16x128xf32>
    %15 = arith.mulf %14, %9 : vector<16x128xf32>
    %16 = arith.addf %9, %15 : vector<16x128xf32>
    %cst_8 = arith.constant 0.797884583 : f32
    %17 = vector.broadcast %cst_8 : f32 to vector<16x128xf32>
    %18 = arith.mulf %17, %16 : vector<16x128xf32>
    %19 = math.tanh %18 : vector<16x128xf32>
    %cst_9 = arith.constant 1.000000e+00 : f32
    %20 = vector.broadcast %cst_9 : f32 to vector<16x128xf32>
    %21 = arith.addf %20, %19 : vector<16x128xf32>
    %22 = arith.mulf %11, %21 : vector<16x128xf32>
    %23 = arith.truncf %22 : vector<16x128xf32> to vector<16x128xbf16>
    %c0_10 = arith.constant 0 : index
    %c0_11 = arith.constant 0 : index
    %24 = vector.load %arg8[%c0_10, %c0_11] : memref<16x32xf32, #tpu.memory_space<vmem>>, vector<16x32xf32>
    %c0_12 = arith.constant 0 : index
    %c0_13 = arith.constant 0 : index
    %25 = vector.load %arg5[%c0_12, %c0_13] : memref<128x32xbf16, #tpu.memory_space<vmem>>, vector<128x32xbf16>
    %cst_14 = arith.constant dense<0.000000e+00> : vector<16x32xf32>
    %26 = tpu.matmul %23, %25, %cst_14 {dimension_numbers = #tpu.dot_dimension_numbers<[1], [0], [0], [1], [0, 0, 1, 1], [], []>} : vector<16x128xbf16>, vector<128x32xbf16>, vector<16x32xf32> -> vector<16x32xf32>
    %27 = arith.addf %24, %26 : vector<16x32xf32>
    %c0_15 = arith.constant 0 : index
    %c0_16 = arith.constant 0 : index
    %28 = vector.load %arg8[%c0_15, %c0_16] : memref<16x32xf32, #tpu.memory_space<vmem>>, vector<16x32xf32>
    tpu.vector_store %arg8[%c0_15, %c0_16], %27 {strides = array<i32>} : memref<16x32xf32, #tpu.memory_space<vmem>>, vector<16x32xf32>,
    %c0_i32_17 = arith.constant 0 : i32
    %29 = arith.cmpi eq, %arg1, %c0_i32_17 : i32
    %30 = arith.extui %29 : i1 to i32
    %c0_i32_18 = arith.constant 0 : i32
    %31 = arith.cmpi ne, %30, %c0_i32_18 : i32
    scf.if %31 {
      %c0_19 = arith.constant 0 : index
      %c0_20 = arith.constant 0 : index
      %32 = vector.load %arg8[%c0_19, %c0_20] : memref<16x32xf32, #tpu.memory_space<vmem>>, vector<16x32xf32>
      %c0_21 = arith.constant 0 : index
      %c0_22 = arith.constant 0 : index
      %33 = vector.load %arg6[%c0_21, %c0_22] : memref<1x32xbf16, #tpu.memory_space<vmem>>, vector<1x32xbf16>
      %34 = arith.extf %33 : vector<1x32xbf16> to vector<1x32xf32>
      %35 = vector.broadcast %34 : vector<1x32xf32> to vector<16x32xf32>
      %36 = arith.addf %32, %35 : vector<16x32xf32>
      %c0_23 = arith.constant 0 : index
      %c0_24 = arith.constant 0 : index
      %37 = vector.load %arg7[%c0_23, %c0_24] : memref<16x32xf32, #tpu.memory_space<vmem>>, vector<16x32xf32>
      tpu.vector_store %arg7[%c0_23, %c0_24], %36 {strides = array<i32>} : memref<16x32xf32, #tpu.memory_space<vmem>>, vector<16x32xf32>,
    } else {
    }
    return
  }
  func.func @transform_0(%arg0: i32, %arg1: i32) -> (i32, i32) {
    %c0_i32 = arith.constant 0 : i32
    %c0_i32_0 = arith.constant 0 : i32
    return %arg0, %c0_i32 : i32, i32
  }
  func.func @transform_1(%arg0: i32, %arg1: i32) -> (i32, i32) {
    %c0_i32 = arith.constant 0 : i32
    %c0_i32_0 = arith.constant 0 : i32
    return %c0_i32, %arg1 : i32, i32
  }
  func.func @transform_2(%arg0: i32, %arg1: i32) -> (i32, i32) {
    %c0_i32 = arith.constant 0 : i32
    %c0_i32_0 = arith.constant 0 : i32
    return %c0_i32, %arg1 : i32, i32
  }
  func.func @transform_3(%arg0: i32, %arg1: i32) -> (i32, i32) {
    %c0_i32 = arith.constant 0 : i32
    %c0_i32_0 = arith.constant 0 : i32
    return %arg1, %c0_i32 : i32, i32
  }
  func.func @transform_4(%arg0: i32, %arg1: i32) -> (i32, i32) {
    %c0_i32 = arith.constant 0 : i32
    %c0_i32_0 = arith.constant 0 : i32
    %c0_i32_1 = arith.constant 0 : i32
    return %c0_i32, %c0_i32_0 : i32, i32
  }
  func.func @transform_5(%arg0: i32, %arg1: i32) -> (i32, i32) {
    %c0_i32 = arith.constant 0 : i32
    %c0_i32_0 = arith.constant 0 : i32
    return %arg0, %c0_i32 : i32, i32
  }
}

</mosaic_0001>

<llo_original>
// kernel: mlp_pallas.1
$region0: #{mlp_pallas.1}
  #allocation0 [shape = 'u32[]', space=smem, size = 0x4, offset = 0x4, fixed_abs, tag = 'smem constant byte address 0x4 - core index']
  #allocation1 [shape = 'u32[144,128]{1,0:T(1,128)}', space=vmem, size = 0x12000, scoped, tag = 'internal scratch']
  #allocation2 [shape = 'f32[16,32]{1,0:T(8,128)}', space=vmem, size = 0x2000, scoped, tag = 'scratch operand']
  %s0 = inlined_call_operand.vmem [shape: bf16[16,32], index: 0, kind: input, shape index: {}]
  %s1 = inlined_call_operand.vmem [shape: bf16[32,128], index: 1, kind: input, shape index: {}]
  %s2 = inlined_call_operand.vmem [shape: bf16[1,128], index: 2, kind: input, shape index: {}]
  %s3 = inlined_call_operand.vmem [shape: bf16[128,32], index: 3, kind: input, shape index: {}]
  %s4 = inlined_call_operand.vmem [shape: bf16[1,32], index: 4, kind: input, shape index: {}]
  %s5 = inlined_call_operand.hbm [shape: f32[16,32], index: 5, kind: output, shape index: {}]
  %s6 = sld [smem:[#allocation0]]
  $region38: #{mlp_pallas.1} parent=0
    _
  %s8 = ssub.s32 1, %s6
  %s9 = scalar_select 0, %s8, %s6
  $region1: #{mlp_pallas.1} parent=0
    #allocation3 [shape = 'u8[8192]{0}', space=vmem, size = 0x2000, scoped, tag = 'output window, operand 0, single buffered']
    #allocation4 [shape = 's32[1]{0}', space=sflag, size = 0x4, scoped, tag = 'scoped memory for mlp_pallas.1']
    %10 = vsyncpa [#allocation4], 0
    // Predicated region
    $region2: #{mlp_pallas.1} parent=1 // pred_check
      _
    $region3: #{mlp_pallas.1} parent=1 // pred_check_branch
      %12 = sbr.rel (0) target = $region5
    $region4: #{mlp_pallas.1} parent=1 // pred_region
      _
    $region5: #{mlp_pallas.1} parent=1 // pred_fallthru
      _
    // Predicated region
    $region6: #{mlp_pallas.1} parent=1 // pred_check
      _
    $region7: #{mlp_pallas.1} parent=1 // pred_check_branch
      %14 = sbr.rel (0) target = $region9
    $region8: #{mlp_pallas.1} parent=1 // pred_region
      _
    $region9: #{mlp_pallas.1} parent=1 // pred_fallthru
      _
    // Predicated region
    $region10: #{mlp_pallas.1} parent=1 // pred_check
      _
    $region11: #{mlp_pallas.1} parent=1 // pred_check_branch
      %16 = sbr.rel (0) target = $region13
    $region12: #{mlp_pallas.1} parent=1 // pred_region
      _
    $region13: #{mlp_pallas.1} parent=1 // pred_fallthru
      _
    // Predicated region
    $region14: #{mlp_pallas.1} parent=1 // pred_check
      _
    $region15: #{mlp_pallas.1} parent=1 // pred_check_branch
      %18 = sbr.rel (0) target = $region17
    $region16: #{mlp_pallas.1} parent=1 // pred_region
      _
    $region17: #{mlp_pallas.1} parent=1 // pred_fallthru
      _
    // Predicated region
    $region18: #{mlp_pallas.1} parent=1 // pred_check
      _
    $region19: #{mlp_pallas.1} parent=1 // pred_check_branch
      %20 = sbr.rel (0) target = $region21
    $region20: #{mlp_pallas.1} parent=1 // pred_region
      _
    $region21: #{mlp_pallas.1} parent=1 // pred_fallthru
      _
    %p22 = scmp.eq.s32.totalorder 0, 0
    // Predicated region
    $region22: #{mlp_pallas.1} parent=1 // pred_check
      %p23 = pneg %p22
    $region23: #{mlp_pallas.1} parent=1 // pred_check_branch
      %25 = sbr.rel (%p23) target = $region25
    $region24: #{mlp_pallas.1} parent=1 // pred_region
      %vm26 = vcmask 261120
      %27 = vst.msk [vmem:[#allocation2] sm:$0xff] %vm26, 0.0
      %28 = vst.msk [vmem:[#allocation2 + $0x8] sm:$0xff] %vm26, 0.0
    $region25: #{mlp_pallas.1} parent=1 // pred_fallthru
      _
    %v29 = vld [vmem:[%s0] sm:$0xf]
    %v30 = vld [vmem:[%s0 + $0x4] sm:$0xf]
    %v31 = vld [vmem:[%s1] sm:$0xf]
    %v32 = vld [vmem:[%s1 + $0x4] sm:$0xf]
    %v33 = vld [vmem:[%s1 + $0x8] sm:$0xf]
    %v34 = vld [vmem:[%s1 + $0xc] sm:$0xf]
    %v35 = vld [vmem:[%s2] sm:$0x1]
    %v36 = vunpack.c.l.bf16 %v35
    %v37 = vlaneseq
    %v38 = vshrl.u32 %v37, 7
    %v39 = vsub.s32 0, %v38
    %v40 = vrot.slane %v36, %v39
    %v43 = vunpack.c.l.b16 %v29
    %v44 = vunpack.c.l.b16 %v30
    %v45 = vpack.c.b16 %v44, %v43
    %v50 = vunpack.c.l.b16 %v31
    %v51 = vunpack.c.l.b16 %v32
    %v52 = vunpack.c.l.b16 %v33
    %v53 = vunpack.c.l.b16 %v34
    %v54 = vpack.c.b16 %v51, %v50
    %v55 = vpack.c.b16 %v53, %v52
    %vm58 = vcmask 261120
    %v60 = vsel %vm58, %v45, 0
    %62 = vmatprep.subr.bf16.mxu0 0
    %63 = vmatpush1.bf16.msra.mxu0 %v54
    %64 = vmatprep.subr.bf16.mxu0 0
    %65 = vmatpush1.bf16.msra.mxu0 %v55
    %66 = vmatprep.subr.bf16.mxu0 0
    %67 = vmatpush1.bf16.msra.mxu0 0
    %68 = vmatprep.subr.bf16.mxu0 0
    %69 = vmatpush1.bf16.msra.mxu0 0
    %70 = vmatprep.subr.bf16.mxu0 0
    %71 = vmatpush1.bf16.msra.mxu0 0
    %72 = vmatprep.subr.bf16.mxu0 0
    %73 = vmatpush1.bf16.msra.mxu0 0
    %74 = vmatprep.subr.bf16.mxu0 0
    %75 = vmatpush1.bf16.msra.mxu0 0
    %76 = vmatprep.subr.bf16.mxu0 0
    %77 = vmatpush1.bf16.msra.mxu0 0
    %78 = vmatprep.subr.bf16.mxu0 0
    %79 = vmatpush1.bf16.msra.mxu0 0
    %80 = vmatprep.subr.bf16.mxu0 0
    %81 = vmatpush1.bf16.msra.mxu0 0
    %82 = vmatprep.subr.bf16.mxu0 0
    %83 = vmatpush1.bf16.msra.mxu0 0
    %84 = vmatprep.subr.bf16.mxu0 0
    %85 = vmatpush1.bf16.msra.mxu0 0
    %86 = vmatprep.subr.bf16.mxu0 0
    %87 = vmatpush1.bf16.msra.mxu0 0
    %88 = vmatprep.subr.bf16.mxu0 0
    %89 = vmatpush1.bf16.msra.mxu0 0
    %90 = vmatprep.subr.bf16.mxu0 0
    %91 = vmatpush1.bf16.msra.mxu0 0
    %92 = vmatprep.subr.bf16.mxu0 0
    %93 = vmatpush1.bf16.msra.mxu0 0
    %94 = vmatprep.mubr.bf16.mxu0 0
    %95 = vmatmul.mubr.bf16.gmra.mrb[0].mxu0 %v60
    %v96 = vpop.f32.mrb[0].mxu0
    %v97 = vadd.f32 %v40, %v96
    %v98 = vpop.f32.mrb[0].mxu0
    %v99 = vpop.f32.mrb[0].mxu0
    %v100 = vadd.f32 %v40, %v99
    %v101 = vpop.f32.mrb[0].mxu0
    %102 = vdwg.mxu0
    %v103 = vmul.f32 %v97, 0.5
    %v104 = vmul.f32 %v100, 0.5
    %v105 = vmul.f32 %v97, 0.044715
    %v106 = vmul.f32 %v100, 0.044715
    %v107 = vmul.f32 %v105, %v97
    %v108 = vmul.f32 %v106, %v100
    %v109 = vmul.f32 %v107, %v97
    %v110 = vmul.f32 %v108, %v100
    %v111 = vadd.f32 %v97, %v109
    %v112 = vadd.f32 %v100, %v110
    %v113 = vmul.f32 %v111, 0.7978846
    %v114 = vmul.f32 %v112, 0.7978846
    %v115 = vtanh.pop %v113
    %v116 = vtanh.pop %v114
    %v117 = vadd.f32 %v115, 1.0
    %v118 = vadd.f32 %v116, 1.0
    %v119 = vmul.f32 %v103, %v117
    %v120 = vmul.f32 %v104, %v118
    %v121 = vpack.c.bf16 %v120, %v119
    %v122 = vld [vmem:[#allocation2] sm:$0xff]
    %v123 = vld [vmem:[#allocation2 + $0x8] sm:$0xff]
    %v124 = vld [vmem:[%s3] sm:$0xf]
    %v125 = vld [vmem:[%s3 + $0x4] sm:$0xf]
    %v126 = vld [vmem:[%s3 + $0x8] sm:$0xf]
    %v127 = vld [vmem:[%s3 + $0xc] sm:$0xf]
    %v128 = vld [vmem:[%s3 + $0x10] sm:$0xf]
    %v129 = vld [vmem:[%s3 + $0x14] sm:$0xf]
    %v130 = vld [vmem:[%s3 + $0x18] sm:$0xf]
    %v131 = vld [vmem:[%s3 + $0x1c] sm:$0xf]
    %v132 = vld [vmem:[%s3 + $0x20] sm:$0xf]
    %v133 = vld [vmem:[%s3 + $0x24] sm:$0xf]
    %v134 = vld [vmem:[%s3 + $0x28] sm:$0xf]
    %v135 = vld [vmem:[%s3 + $0x2c] sm:$0xf]
    %v136 = vld [vmem:[%s3 + $0x30] sm:$0xf]
    %v137 = vld [vmem:[%s3 + $0x34] sm:$0xf]
    %v138 = vld [vmem:[%s3 + $0x38] sm:$0xf]
    %v139 = vld [vmem:[%s3 + $0x3c] sm:$0xf]
    %v156 = vunpack.c.l.b16 %v124
    %v157 = vunpack.c.l.b16 %v125
    %v158 = vunpack.c.l.b16 %v126
    %v159 = vunpack.c.l.b16 %v127
    %v160 = vunpack.c.l.b16 %v128
    %v161 = vunpack.c.l.b16 %v129
    %v162 = vunpack.c.l.b16 %v130
    %v163 = vunpack.c.l.b16 %v131
    %v164 = vunpack.c.l.b16 %v132
    %v165 = vunpack.c.l.b16 %v133
    %v166 = vunpack.c.l.b16 %v134
    %v167 = vunpack.c.l.b16 %v135
    %v168 = vunpack.c.l.b16 %v136
    %v169 = vunpack.c.l.b16 %v137
    %v170 = vunpack.c.l.b16 %v138
    %v171 = vunpack.c.l.b16 %v139
    %v172 = vpack.c.b16 %v157, %v156
    %v173 = vpack.c.b16 %v159, %v158
    %v174 = vpack.c.b16 %v161, %v160
    %v175 = vpack.c.b16 %v163, %v162
    %v176 = vpack.c.b16 %v165, %v164
    %v177 = vpack.c.b16 %v167, %v166
    %v178 = vpack.c.b16 %v169, %v168
    %v179 = vpack.c.b16 %v171, %v170
    %188 = vmatprep.subr.bf16.mxu0 0
    %189 = vmatpush1.bf16.msra.mxu0 %v172
    %190 = vmatprep.subr.bf16.mxu0 0
    %191 = vmatpush1.bf16.msra.mxu0 %v173
    %192 = vmatprep.subr.bf16.mxu0 0
    %193 = vmatpush1.bf16.msra.mxu0 %v174
    %194 = vmatprep.subr.bf16.mxu0 0
    %195 = vmatpush1.bf16.msra.mxu0 %v175
    %196 = vmatprep.subr.bf16.mxu0 0
    %197 = vmatpush1.bf16.msra.mxu0 %v176
    %198 = vmatprep.subr.bf16.mxu0 0
    %199 = vmatpush1.bf16.msra.mxu0 %v177
    %200 = vmatprep.subr.bf16.mxu0 0
    %201 = vmatpush1.bf16.msra.mxu0 %v178
    %202 = vmatprep.subr.bf16.mxu0 0
    %203 = vmatpush1.bf16.msra.mxu0 %v179
    %204 = vmatprep.subr.bf16.mxu0 0
    %205 = vmatpush1.bf16.msra.mxu0 0
    %206 = vmatprep.subr.bf16.mxu0 0
    %207 = vmatpush1.bf16.msra.mxu0 0
    %208 = vmatprep.subr.bf16.mxu0 0
    %209 = vmatpush1.bf16.msra.mxu0 0
    %210 = vmatprep.subr.bf16.mxu0 0
    %211 = vmatpush1.bf16.msra.mxu0 0
    %212 = vmatprep.subr.bf16.mxu0 0
    %213 = vmatpush1.bf16.msra.mxu0 0
    %214 = vmatprep.subr.bf16.mxu0 0
    %215 = vmatpush1.bf16.msra.mxu0 0
    %216 = vmatprep.subr.bf16.mxu0 0
    %217 = vmatpush1.bf16.msra.mxu0 0
    %218 = vmatprep.subr.bf16.mxu0 0
    %219 = vmatpush1.bf16.msra.mxu0 0
    %220 = vmatprep.mubr.bf16.mxu0 0
    %221 = vmatmul.mubr.bf16.gmra.mrb[0].mxu0 %v121
    %v222 = vpop.f32.mrb[0].mxu0
    %v223 = vadd.f32 0.0, %v222
    %v224 = vpop.f32.mrb[0].mxu0
    %v225 = vpop.f32.mrb[0].mxu0
    %v226 = vadd.f32 0.0, %v225
    %v227 = vpop.f32.mrb[0].mxu0
    %228 = vdwg.mxu0
    %v229 = vadd.f32 %v122, %v223
    %v230 = vadd.f32 %v123, %v226
    %231 = vst.msk [vmem:[#allocation2] sm:$0xff] %vm58, %v229
    %232 = vst.msk [vmem:[#allocation2 + $0x8] sm:$0xff] %vm58, %v230
    // Predicated region
    $region26: #{mlp_pallas.1} parent=1 // pred_check
      %p233 = pneg %p22
    $region27: #{mlp_pallas.1} parent=1 // pred_check_branch
      %235 = sbr.rel (%p233) target = $region29
    $region28: #{mlp_pallas.1} parent=1 // pred_region
      %v236 = vld [vmem:[#allocation2] sm:$0xff]
      %v237 = vld [vmem:[#allocation2 + $0x8] sm:$0xff]
      %v238 = vld [vmem:[%s4] sm:$0x1]
      %v239 = vunpack.c.l.bf16 %v238
      %v240 = vlaneseq
      %v241 = vshrl.u32 %v240, 7
      %v242 = vsub.s32 0, %v241
      %v243 = vrot.slane %v239, %v242
      %v244 = vadd.f32 %v236, %v243
      %v245 = vadd.f32 %v237, %v243
      %246 = vst.msk [vmem:[#allocation3] sm:$0xff] %vm58, %v244
      %247 = vst.msk [vmem:[#allocation3 + $0x8] sm:$0xff] %vm58, %v245
    $region29: #{mlp_pallas.1} parent=1 // pred_fallthru
      _
    // Predicated region
    $region30: #{mlp_pallas.1} parent=1 // pred_check
      _
    $region31: #{mlp_pallas.1} parent=1 // pred_check_branch
      %249 = sbr.rel (0) target = $region33
    $region32: #{mlp_pallas.1} parent=1 // pred_region
      %s251 = ssub.s32 256, 256
      %252 = vsyncadd [#allocation4], %s251
      %s253 = sshll.u32 [#allocation3], 4
      %s254 = int_to_ptr.vmem [resolvable:$true] %s253
      %259 = dma.vmem_to_hbm [thread:$0]  %s254, 256, %s5, [#allocation4], 128, 128, 8
    $region33: #{mlp_pallas.1} parent=1 // pred_fallthru
      _
    // Predicated region
    $region34: #{mlp_pallas.1} parent=1 // pred_check
      _
    $region35: #{mlp_pallas.1} parent=1 // pred_check_branch
      %261 = sbr.rel (0) target = $region37
    $region36: #{mlp_pallas.1} parent=1 // pred_region
      %262 = dma.done [#allocation4], 256
    $region37: #{mlp_pallas.1} parent=1 // pred_fallthru
      _
    %263 = vsyncpa [#allocation4], 1

</llo_original>
